<compile_context>
chip_gen: v5e
topology: v5e:2x2
jax: 0.10.0
libtpu: 0.0.40
codegen_flags: <defaults>
</compile_context>

<pallas_src>
import functools

import jax
import jax.numpy as jnp
from jax.experimental import pallas as pl
from jax.experimental.pallas import tpu as pltpu

_LANE = 128      # lane width of a vreg
_SUBLANE = 8     # f32 sublane count


def _round_up(x, m):
    return ((x + m - 1) // m) * m


def linear_predictor_kernel(x_ref, we_ref, be_ref, wf_ref, bf_ref, o_ref):
    # Frozen encoder: h = x @ We^T + b_enc   (weights pre-transposed + padded).
    h = (
        jnp.dot(x_ref[...], we_ref[...], preferred_element_type=jnp.float32)
        + be_ref[...]
    )
    # Probe head: y = h @ Wf^T + b_fc.  Cast h to the weight dtype so a bf16
    # weight path still hits the native MXU datapath; accumulate in f32.
    y = (
        jnp.dot(h.astype(wf_ref.dtype), wf_ref[...],
                preferred_element_type=jnp.float32)
        + bf_ref[...]
    )
    o_ref[...] = y.astype(o_ref.dtype)


def prepare_params(w_enc, b_enc, w_fc, b_fc):
    """One-time prep for the frozen parameters: transpose + lane-pad to 128.

    w_enc: (C_in, F) torch.nn.Linear layout, b_enc: (C_in,)
    w_fc:  (C_out, C_in),                    b_fc:  (C_out,)
    Returns (we_t, be, wf_t, bf) padded so every matmul dim is a 128 multiple.
    Zero padding is exact: padded contraction rows/cols contribute nothing.
    """
    c_in, f = w_enc.shape
    c_out = w_fc.shape[0]
    f_p = _round_up(f, _LANE)
    c_in_p = _round_up(c_in, _LANE)
    c_out_p = _round_up(c_out, _LANE)

    we_t = jnp.zeros((f_p, c_in_p), w_enc.dtype).at[:f, :c_in].set(w_enc.T)
    be = jnp.zeros((1, c_in_p), b_enc.dtype).at[0, :c_in].set(b_enc)
    wf_t = jnp.zeros((c_in_p, c_out_p), w_fc.dtype).at[:c_in, :c_out].set(w_fc.T)
    bf = jnp.zeros((1, c_out_p), b_fc.dtype).at[0, :c_out].set(b_fc)
    return we_t, be, wf_t, bf


@functools.partial(jax.jit, static_argnames=("c_out",))
def linear_predictor(x, we_t, be, wf_t, bf, *, c_out):
    """x: (B, F) raw features.  Padded/pre-transposed params from prepare_params."""
    b, f = x.shape
    f_p, c_in_p = we_t.shape
    c_out_p = wf_t.shape[1]

    # Batch tile: 128 rows when the batch is large enough, otherwise the batch
    # rounded up to the f32 sublane multiple.  Weights stay resident, so VMEM
    # use is independent of B.
    tile_m = _LANE if b >= _LANE else _round_up(b, _SUBLANE)
    b_p = _round_up(b, tile_m)

    # Zero-pad x to the padded batch/feature extents (fused under jit).
    x_p = jnp.zeros((b_p, f_p), x.dtype).at[:b, :f].set(x)

    # TODO(synk): for real encoder widths (F, C_in >= 4K) add a K grid axis with
    # a VMEM f32 accumulator + pl.when init/writeback and set vmem_limit_bytes,
    # so the resident (F, C_in) weight slab does not blow v7x's 64 MiB VMEM.
    out = pl.pallas_call(
        linear_predictor_kernel,
        out_shape=jax.ShapeDtypeStruct((b_p, c_out_p), x.dtype),
        grid=(pl.cdiv(b_p, tile_m),),
        in_specs=[
            pl.BlockSpec((tile_m, f_p), lambda i: (i, 0)),
            pl.BlockSpec((f_p, c_in_p), lambda i: (0, 0)),      # VMEM-resident
            pl.BlockSpec((1, c_in_p), lambda i: (0, 0)),        # VMEM-resident
            pl.BlockSpec((c_in_p, c_out_p), lambda i: (0, 0)),  # VMEM-resident
            pl.BlockSpec((1, c_out_p), lambda i: (0, 0)),       # VMEM-resident
        ],
        out_specs=pl.BlockSpec((tile_m, c_out_p), lambda i: (i, 0)),
        compiler_params=pltpu.CompilerParams(
            dimension_semantics=("parallel",),
        ),
    )(x_p, we_t, be, wf_t, bf)

    return out[:b, :c_out]


if __name__ == "__main__":
    # Small, deterministic shapes: batch=8, raw feature dim=32,
    # encoder output (in_channels)=32, probe output (out_channels)=16.
    B, F, C_in, C_out = 8, 32, 32, 16

    key = jax.random.PRNGKey(0)
    kx, kwe, kbe, kwf, kbf = jax.random.split(key, 5)

    x = jax.random.normal(kx, (B, F), dtype=jnp.float32)
    # Deterministic parameter init (torch.nn.Linear-style scaling).
    w_enc = jax.random.uniform(kwe, (C_in, F), jnp.float32, -1.0, 1.0) / jnp.sqrt(F)
    b_enc = jax.random.uniform(kbe, (C_in,), jnp.float32, -1.0, 1.0) / jnp.sqrt(F)
    w_fc = jax.random.uniform(kwf, (C_out, C_in), jnp.float32, -1.0, 1.0) / jnp.sqrt(C_in)
    b_fc = jax.random.uniform(kbf, (C_out,), jnp.float32, -1.0, 1.0) / jnp.sqrt(C_in)

    # One-time frozen-parameter prep (transpose + lane padding).
    we_t, be, wf_t, bf = prepare_params(w_enc, b_enc, w_fc, b_fc)
    we_t, be, wf_t, bf = jax.block_until_ready((we_t, be, wf_t, bf))

    out = linear_predictor(x, we_t, be, wf_t, bf, c_out=C_out)
    out = jax.block_until_ready(out)

    # Pure-JAX reference (same math as the PyTorch forward).
    ref = (x @ w_enc.T + b_enc) @ w_fc.T + b_fc
    assert out.shape == (B, C_out)
    assert jnp.allclose(out, ref, atol=1e-4, rtol=1e-4)

    print("KERNEL_OK")
</pallas_src>

<mosaic_0001>
module attributes {stable_mosaic.version = 11 : i64} {
  func.func @linear_predictor_kernel(%arg0: i32, %arg1: memref<8x128xf32, #tpu.memory_space<vmem>>, %arg2: memref<128x128xf32, #tpu.memory_space<vmem>>, %arg3: memref<1x128xf32, #tpu.memory_space<vmem>>, %arg4: memref<128x128xf32, #tpu.memory_space<vmem>>, %arg5: memref<1x128xf32, #tpu.memory_space<vmem>>, %arg6: memref<8x128xf32, #tpu.memory_space<vmem>>) attributes {dimension_semantics = [#tpu.dimension_semantics<parallel>], iteration_bounds = array<i64: 1>, scalar_prefetch = 0 : i64, scratch_operands = 0 : i64, tpu.core_type = #tpu.core_type<tc>, window_params = [{transform_indices = @transform_0, window_bounds = array<i64: 8, 128>}, {pipeline_mode = #tpu.pipeline_mode<synchronous>, transform_indices = @transform_1, window_bounds = array<i64: 128, 128>}, {pipeline_mode = #tpu.pipeline_mode<synchronous>, transform_indices = @transform_2, window_bounds = array<i64: 1, 128>}, {pipeline_mode = #tpu.pipeline_mode<synchronous>, transform_indices = @transform_3, window_bounds = array<i64: 128, 128>}, {pipeline_mode = #tpu.pipeline_mode<synchronous>, transform_indices = @transform_4, window_bounds = array<i64: 1, 128>}, {transform_indices = @transform_5, window_bounds = array<i64: 8, 128>}]} {
    %c0 = arith.constant 0 : index
    %c0_0 = arith.constant 0 : index
    %0 = vector.load %arg1[%c0, %c0_0] : memref<8x128xf32, #tpu.memory_space<vmem>>, vector<8x128xf32>
    %c0_1 = arith.constant 0 : index
    %c0_2 = arith.constant 0 : index
    %1 = vector.load %arg2[%c0_1, %c0_2] : memref<128x128xf32, #tpu.memory_space<vmem>>, vector<128x128xf32>
    %cst = arith.constant dense<0.000000e+00> : vector<8x128xf32>
    %2 = tpu.matmul %0, %1, %cst {dimension_numbers = #tpu.dot_dimension_numbers<[1], [0], [0], [1], [0, 0, 1, 1], [], []>} : vector<8x128xf32>, vector<128x128xf32>, vector<8x128xf32> -> vector<8x128xf32>
    %c0_3 = arith.constant 0 : index
    %c0_4 = arith.constant 0 : index
    %3 = vector.load %arg3[%c0_3, %c0_4] : memref<1x128xf32, #tpu.memory_space<vmem>>, vector<1x128xf32>
    %4 = vector.broadcast %3 : vector<1x128xf32> to vector<8x128xf32>
    %5 = arith.addf %2, %4 : vector<8x128xf32>
    %c0_5 = arith.constant 0 : index
    %c0_6 = arith.constant 0 : index
    %6 = vector.load %arg4[%c0_5, %c0_6] : memref<128x128xf32, #tpu.memory_space<vmem>>, vector<128x128xf32>
    %cst_7 = arith.constant dense<0.000000e+00> : vector<8x128xf32>
    %7 = tpu.matmul %5, %6, %cst_7 {dimension_numbers = #tpu.dot_dimension_numbers<[1], [0], [0], [1], [0, 0, 1, 1], [], []>} : vector<8x128xf32>, vector<128x128xf32>, vector<8x128xf32> -> vector<8x128xf32>
    %c0_8 = arith.constant 0 : index
    %c0_9 = arith.constant 0 : index
    %8 = vector.load %arg5[%c0_8, %c0_9] : memref<1x128xf32, #tpu.memory_space<vmem>>, vector<1x128xf32>
    %9 = vector.broadcast %8 : vector<1x128xf32> to vector<8x128xf32>
    %10 = arith.addf %7, %9 : vector<8x128xf32>
    %c0_10 = arith.constant 0 : index
    %c0_11 = arith.constant 0 : index
    %11 = vector.load %arg6[%c0_10, %c0_11] : memref<8x128xf32, #tpu.memory_space<vmem>>, vector<8x128xf32>
    tpu.vector_store %arg6[%c0_10, %c0_11], %10 {strides = array<i32>} : memref<8x128xf32, #tpu.memory_space<vmem>>, vector<8x128xf32>,
    return
  }
  func.func @transform_0(%arg0: i32) -> (i32, i32) {
    %c0_i32 = arith.constant 0 : i32
    %c0_i32_0 = arith.constant 0 : i32
    return %arg0, %c0_i32 : i32, i32
  }
  func.func @transform_1(%arg0: i32) -> (i32, i32) {
    %c0_i32 = arith.constant 0 : i32
    %c0_i32_0 = arith.constant 0 : i32
    %c0_i32_1 = arith.constant 0 : i32
    return %c0_i32, %c0_i32_0 : i32, i32
  }
  func.func @transform_2(%arg0: i32) -> (i32, i32) {
    %c0_i32 = arith.constant 0 : i32
    %c0_i32_0 = arith.constant 0 : i32
    %c0_i32_1 = arith.constant 0 : i32
    return %c0_i32, %c0_i32_0 : i32, i32
  }
  func.func @transform_3(%arg0: i32) -> (i32, i32) {
    %c0_i32 = arith.constant 0 : i32
    %c0_i32_0 = arith.constant 0 : i32
    %c0_i32_1 = arith.constant 0 : i32
    return %c0_i32, %c0_i32_0 : i32, i32
  }
  func.func @transform_4(%arg0: i32) -> (i32, i32) {
    %c0_i32 = arith.constant 0 : i32
    %c0_i32_0 = arith.constant 0 : i32
    %c0_i32_1 = arith.constant 0 : i32
    return %c0_i32, %c0_i32_0 : i32, i32
  }
  func.func @transform_5(%arg0: i32) -> (i32, i32) {
    %c0_i32 = arith.constant 0 : i32
    %c0_i32_0 = arith.constant 0 : i32
    return %arg0, %c0_i32 : i32, i32
  }
}

</mosaic_0001>

<llo_original>
// kernel: linear_predictor.1
$region0: #{linear_predictor.1}
  #allocation0 [shape = 'u32[]', space=smem, size = 0x4, offset = 0x4, fixed_abs, tag = 'smem constant byte address 0x4 - core index']
  #allocation1 [shape = 'u32[72,128]{1,0:T(1,128)}', space=vmem, size = 0x9000, scoped, tag = 'internal scratch']
  %s0 = inlined_call_operand.vmem [shape: f32[8,128], index: 0, kind: input, shape index: {}]
  %s1 = inlined_call_operand.hbm [shape: f32[128,128], index: 1, kind: input, shape index: {}]
  %s2 = inlined_call_operand.vmem [shape: f32[1,128], index: 2, kind: input, shape index: {}]
  %s3 = inlined_call_operand.hbm [shape: f32[128,128], index: 3, kind: input, shape index: {}]
  %s4 = inlined_call_operand.vmem [shape: f32[1,128], index: 4, kind: input, shape index: {}]
  %s5 = inlined_call_operand.hbm [shape: f32[8,128], index: 5, kind: output, shape index: {}]
  %s6 = sld [smem:[#allocation0]]
  $region38: #{linear_predictor.1} parent=0
    _
  %s8 = ssub.s32 1, %s6
  %s9 = scalar_select 0, %s8, %s6
  $region1: #{linear_predictor.1} parent=0
    #allocation2 [shape = 'u8[65536]{0}', space=vmem, size = 0x10000, scoped, tag = 'input window, operand 1, single buffered']
    #allocation3 [shape = 's32[1]{0}', space=sflag, size = 0x4, scoped, tag = 'scoped memory for linear_predictor.1']
    #allocation4 [shape = 's32[1]{0}', space=sflag, size = 0x4, scoped, tag = 'scoped memory for linear_predictor.1']
    #allocation5 [shape = 'u8[65536]{0}', space=vmem, size = 0x10000, scoped, tag = 'input window, operand 3, single buffered']
    #allocation6 [shape = 's32[1]{0}', space=sflag, size = 0x4, scoped, tag = 'scoped memory for linear_predictor.1']
    #allocation7 [shape = 'u8[4096]{0}', space=vmem, size = 0x1000, scoped, tag = 'output window, operand 0, single buffered']
    %10 = vsyncpa [#allocation3], 0
    %11 = vsyncpa [#allocation6], 0
    %12 = vsyncpa [#allocation4], 0
    // Predicated region
    $region2: #{linear_predictor.1} parent=1 // pred_check
      _
    $region3: #{linear_predictor.1} parent=1 // pred_check_branch
      %14 = sbr.rel (0) target = $region5
    $region4: #{linear_predictor.1} parent=1 // pred_region
      _
    $region5: #{linear_predictor.1} parent=1 // pred_fallthru
      _
    // Predicated region
    $region6: #{linear_predictor.1} parent=1 // pred_check
      _
    $region7: #{linear_predictor.1} parent=1 // pred_check_branch
      %16 = sbr.rel (0) target = $region9
    $region8: #{linear_predictor.1} parent=1 // pred_region
      %18 = vsyncadd [#allocation3], 0
      %s19 = sshll.u32 %s1, 4
      %s20 = int_to_ptr.hbm [resolvable:$true] %s19
      %s21 = sshll.u32 [#allocation2], 4
      %s22 = int_to_ptr.vmem [resolvable:$true] %s21
      %27 = dma.hbm_to_vmem [thread:$0]  %s20, 2048, %s22, [#allocation3], 128, 128, 8
    $region9: #{linear_predictor.1} parent=1 // pred_fallthru
      _
    // Predicated region
    $region10: #{linear_predictor.1} parent=1 // pred_check
      _
    $region11: #{linear_predictor.1} parent=1 // pred_check_branch
      %29 = sbr.rel (0) target = $region13
    $region12: #{linear_predictor.1} parent=1 // pred_region
      _
    $region13: #{linear_predictor.1} parent=1 // pred_fallthru
      _
    // Predicated region
    $region14: #{linear_predictor.1} parent=1 // pred_check
      _
    $region15: #{linear_predictor.1} parent=1 // pred_check_branch
      %31 = sbr.rel (0) target = $region17
    $region16: #{linear_predictor.1} parent=1 // pred_region
      %33 = vsyncadd [#allocation6], 0
      %s34 = sshll.u32 %s3, 4
      %s35 = int_to_ptr.hbm [resolvable:$true] %s34
      %s36 = sshll.u32 [#allocation5], 4
      %s37 = int_to_ptr.vmem [resolvable:$true] %s36
      %42 = dma.hbm_to_vmem [thread:$0]  %s35, 2048, %s37, [#allocation6], 128, 128, 8
    $region17: #{linear_predictor.1} parent=1 // pred_fallthru
      _
    // Predicated region
    $region18: #{linear_predictor.1} parent=1 // pred_check
      _
    $region19: #{linear_predictor.1} parent=1 // pred_check_branch
      %44 = sbr.rel (0) target = $region21
    $region20: #{linear_predictor.1} parent=1 // pred_region
      _
    $region21: #{linear_predictor.1} parent=1 // pred_fallthru
      _
    // Predicated region
    $region22: #{linear_predictor.1} parent=1 // pred_check
      _
    $region23: #{linear_predictor.1} parent=1 // pred_check_branch
      %46 = sbr.rel (0) target = $region25
    $region24: #{linear_predictor.1} parent=1 // pred_region
      %48 = dma.done [#allocation3], 2048
    $region25: #{linear_predictor.1} parent=1 // pred_fallthru
      _
    // Predicated region
    $region26: #{linear_predictor.1} parent=1 // pred_check
      _
    $region27: #{linear_predictor.1} parent=1 // pred_check_branch
      %50 = sbr.rel (0) target = $region29
    $region28: #{linear_predictor.1} parent=1 // pred_region
      %52 = dma.done [#allocation6], 2048
    $region29: #{linear_predictor.1} parent=1 // pred_fallthru
      _
    %v53 = vld [vmem:[%s0] sm:$0xff]
    %v54 = vld [vmem:[#allocation2] sm:$0xff]
    %v55 = vld [vmem:[#allocation2 + $0x8] sm:$0xff]
    %v56 = vld [vmem:[#allocation2 + $0x10] sm:$0xff]
    %v57 = vld [vmem:[#allocation2 + $0x18] sm:$0xff]
    %v58 = vld [vmem:[#allocation2 + $0x20] sm:$0xff]
    %v59 = vld [vmem:[#allocation2 + $0x28] sm:$0xff]
    %v60 = vld [vmem:[#allocation2 + $0x30] sm:$0xff]
    %v61 = vld [vmem:[#allocation2 + $0x38] sm:$0xff]
    %v62 = vld [vmem:[#allocation2 + $0x40] sm:$0xff]
    %v63 = vld [vmem:[#allocation2 + $0x48] sm:$0xff]
    %v64 = vld [vmem:[#allocation2 + $0x50] sm:$0xff]
    %v65 = vld [vmem:[#allocation2 + $0x58] sm:$0xff]
    %v66 = vld [vmem:[#allocation2 + $0x60] sm:$0xff]
    %v67 = vld [vmem:[#allocation2 + $0x68] sm:$0xff]
    %v68 = vld [vmem:[#allocation2 + $0x70] sm:$0xff]
    %v69 = vld [vmem:[#allocation2 + $0x78] sm:$0xff]
    %v70 = vld [vmem:[%s2] sm:$0x1]
    %v72 = vperm.slane %v70, 0
    %74 = vmatpush.msra.mxu0 %v69
    %75 = vmatpush.msra.mxu0 %v68
    %76 = vmatpush.msra.mxu0 %v67
    %77 = vmatpush.msra.mxu0 %v66
    %78 = vmatpush.msra.mxu0 %v65
    %79 = vmatpush.msra.mxu0 %v64
    %80 = vmatpush.msra.mxu0 %v63
    %81 = vmatpush.msra.mxu0 %v62
    %82 = vmatpush.msra.mxu0 %v61
    %83 = vmatpush.msra.mxu0 %v60
    %84 = vmatpush.msra.mxu0 %v59
    %85 = vmatpush.msra.mxu0 %v58
    %86 = vmatpush.msra.mxu0 %v57
    %87 = vmatpush.msra.mxu0 %v56
    %88 = vmatpush.msra.mxu0 %v55
    %89 = vmatpush.msra.mxu0 %v54
    %90 = vmatmul.f32.gmra.mxu0 %v53
    %v91 = vpop.f32.mrf.mxu0
    %v92 = vadd.f32 %v72, %v91
    %93 = vdwg.mxu0
    %v94 = vld [vmem:[#allocation5] sm:$0xff]
    %v95 = vld [vmem:[#allocation5 + $0x8] sm:$0xff]
    %v96 = vld [vmem:[#allocation5 + $0x10] sm:$0xff]
    %v97 = vld [vmem:[#allocation5 + $0x18] sm:$0xff]
    %v98 = vld [vmem:[#allocation5 + $0x20] sm:$0xff]
    %v99 = vld [vmem:[#allocation5 + $0x28] sm:$0xff]
    %v100 = vld [vmem:[#allocation5 + $0x30] sm:$0xff]
    %v101 = vld [vmem:[#allocation5 + $0x38] sm:$0xff]
    %v102 = vld [vmem:[#allocation5 + $0x40] sm:$0xff]
    %v103 = vld [vmem:[#allocation5 + $0x48] sm:$0xff]
    %v104 = vld [vmem:[#allocation5 + $0x50] sm:$0xff]
    %v105 = vld [vmem:[#allocation5 + $0x58] sm:$0xff]
    %v106 = vld [vmem:[#allocation5 + $0x60] sm:$0xff]
    %v107 = vld [vmem:[#allocation5 + $0x68] sm:$0xff]
    %v108 = vld [vmem:[#allocation5 + $0x70] sm:$0xff]
    %v109 = vld [vmem:[#allocation5 + $0x78] sm:$0xff]
    %v110 = vld [vmem:[%s4] sm:$0x1]
    %v112 = vperm.slane %v110, 0
    %114 = vmatpush.msra.mxu0 %v109
    %115 = vmatpush.msra.mxu0 %v108
    %116 = vmatpush.msra.mxu0 %v107
    %117 = vmatpush.msra.mxu0 %v106
    %118 = vmatpush.msra.mxu0 %v105
    %119 = vmatpush.msra.mxu0 %v104
    %120 = vmatpush.msra.mxu0 %v103
    %121 = vmatpush.msra.mxu0 %v102
    %122 = vmatpush.msra.mxu0 %v101
    %123 = vmatpush.msra.mxu0 %v100
    %124 = vmatpush.msra.mxu0 %v99
    %125 = vmatpush.msra.mxu0 %v98
    %126 = vmatpush.msra.mxu0 %v97
    %127 = vmatpush.msra.mxu0 %v96
    %128 = vmatpush.msra.mxu0 %v95
    %129 = vmatpush.msra.mxu0 %v94
    %130 = vmatmul.f32.gmra.mxu0 %v92
    %v131 = vpop.f32.mrf.mxu0
    %v132 = vadd.f32 %v112, %v131
    %133 = vdwg.mxu0
    %134 = vst [vmem:[#allocation7] sm:$0xff] %v132
    // Predicated region
    $region30: #{linear_predictor.1} parent=1 // pred_check
      _
    $region31: #{linear_predictor.1} parent=1 // pred_check_branch
      %136 = sbr.rel (0) target = $region33
    $region32: #{linear_predictor.1} parent=1 // pred_region
      %138 = vsyncadd [#allocation4], 0
      %s140 = sshll.u32 [#allocation7], 4
      %s141 = int_to_ptr.vmem [resolvable:$true] %s140
      %s142 = sshll.u32 %s5, 4
      %s143 = int_to_ptr.hbm [resolvable:$true] %s142
      %145 = dma.vmem_to_hbm [thread:$0]  %s141, 128, %s143, [#allocation4]
    $region33: #{linear_predictor.1} parent=1 // pred_fallthru
      _
    // Predicated region
    $region34: #{linear_predictor.1} parent=1 // pred_check
      _
    $region35: #{linear_predictor.1} parent=1 // pred_check_branch
      %147 = sbr.rel (0) target = $region37
    $region36: #{linear_predictor.1} parent=1 // pred_region
      %149 = dma.done [#allocation4], 128
    $region37: #{linear_predictor.1} parent=1 // pred_fallthru
      _
    %150 = vsyncpa [#allocation3], 1
    %151 = vsyncpa [#allocation6], 1
    %152 = vsyncpa [#allocation4], 1

</llo_original>
